<compile_context>
chip_gen: v7x
topology: tpu7x:2x2x1
jax: 0.10.0
libtpu: 0.0.40
codegen_flags: <defaults>
</compile_context>

<pallas_src>
import functools
import math

import jax
import jax.numpy as jnp
from jax.experimental import pallas as pl
from jax.experimental.pallas import tpu as pltpu


def _round_up(x, m):
    return (x + m - 1) // m * m


def _vmem_capacity_bytes():
    # Generation-aware VMEM capacity; conservative 64 MiB (v7x per-TC) fallback.
    try:
        cap = getattr(pltpu.get_tpu_info(), "vmem_capacity_bytes", None)
        if cap:
            return int(cap)
    except Exception:
        pass
    return 64 * 1024 * 1024


def _spatial_reg_loss_kernel(norm, ignore_index, future_discount, S, TN, C, P,
                             pred_ref, targ_ref, sum_ref, cnt_ref):
    # (TN, C*P) sublane/lane-dense blocks; upcast to f32 in-kernel (VPU work,
    # hidden under the HBM DMA; required on v5e which has no bf16 VPU).
    p = pred_ref[...].astype(jnp.float32)          # (TN, C*P)
    t = targ_ref[...].astype(jnp.float32)          # (TN, C*P)
    d = p - t

    if norm == 1:                                  # F.l1_loss
        e = jnp.abs(d)
    elif norm == 2:                                # F.mse_loss
        e = d * d
    elif norm == 1.5:                              # F.smooth_l1_loss (beta=1.0)
        ad = jnp.abs(d)
        e = jnp.where(ad < 1.0, 0.5 * d * d, ad - 0.5)
    else:
        raise ValueError(f'Expected norm 1, 1.5 or 2, but got norm={norm}')

    # Channel sum as C-1 static lane-slice adds -> (TN, P).
    esum = e[:, 0:P]
    for c in range(1, C):
        esum = esum + e[:, c * P:(c + 1) * P]

    # Mask from channel 0 of the target.
    mask_f = (t[:, 0:P] != jnp.float32(ignore_index)).astype(jnp.float32)

    # Per-row future discount computed in-kernel (no extra input / DMA),
    # skipped at trace time for the common future_discount == 1.0 case.
    if future_discount != 1.0 and S > 1:
        row0 = pl.program_id(0) * TN
        idx = row0 + jax.lax.broadcasted_iota(jnp.int32, (TN, 1), 0)
        s_idx = idx % S                            # timestep of each row
        s_f = s_idx.astype(jnp.float32)
        if future_discount > 0.0:
            disc = jnp.exp(s_f * jnp.float32(math.log(future_discount)))
        elif future_discount == 0.0:
            disc = (s_idx == 0).astype(jnp.float32)
        else:  # negative discount: fd**s = |fd|**s * (-1)**s
            mag = jnp.exp(s_f * jnp.float32(math.log(-future_discount)))
            disc = jnp.where(s_idx % 2 == 0, mag, -mag)
        w = disc * mask_f                          # (TN, P)
    else:
        w = mask_f

    # Reduce only over the major TN axis (VPU adds); write per-block partials.
    sum_ref[0] = jnp.sum(esum * w, axis=0, keepdims=True)   # (1, P)
    cnt_ref[0] = jnp.sum(mask_f, axis=0, keepdims=True)     # (1, P)


def spatial_regression_loss(prediction, target, *, norm,
                            ignore_index=255, future_discount=1.0):
    assert prediction.ndim == 5, 'Must be a 5D tensor'
    B, S, C, H, W = prediction.shape
    N, P = B * S, H * W
    L = C * P

    # Row-major contiguous views: (B,S,C,H,W) -> (N, C*P). Inputs keep their
    # original dtype (halves HBM traffic for bf16); the kernel upcasts to f32.
    pred2 = prediction.reshape(N, L)
    targ2 = target.reshape(N, L)

    # ---- generation-aware block sizing --------------------------------------
    in_itemsize = max(jnp.dtype(prediction.dtype).itemsize,
                      jnp.dtype(target.dtype).itemsize)
    row_in_bytes = L * in_itemsize                  # one block row of one input
    # Working set per block row: 2 inputs x 2 pipeline buffers (input dtype)
    # plus ~4 block-sized f32 in-kernel temporaries (p/t, d, e, e*w).
    row_ws_bytes = 2 * 2 * row_in_bytes + 4 * L * 4

    vmem_capacity = _vmem_capacity_bytes()
    vmem_cap = max(32 << 20, vmem_capacity - (16 << 20))     # leave HW headroom
    block_budget = max(16 << 20, vmem_cap - (4 << 20))       # outputs / misc
    TN = max(8, (block_budget // row_ws_bytes) // 8 * 8)

    # Cap per-input DMA block (~8 MiB on 128 MiB chips, ~4 MiB on 64 MiB v7x).
    target_in_block = (8 << 20) if vmem_capacity >= (96 << 20) else (4 << 20)
    TN = min(TN, max(8, (target_in_block // row_in_bytes) // 8 * 8))

    # Keep >= 2 grid blocks so both v7x TensorCores get work (parallel axis).
    TN = min(TN, max(8, _round_up((N + 1) // 2, 8)))

    N_pad = _round_up(N, TN)
    nblocks = N_pad // TN

    if N_pad != N:
        pad = N_pad - N
        pred2 = jnp.pad(pred2, ((0, pad), (0, 0)))
        # Padded rows get channel-0 == ignore_index -> fully masked out.
        targ2 = jnp.pad(targ2, ((0, pad), (0, 0)),
                        constant_values=ignore_index)

    vmem_limit = int(min(vmem_cap,
                         max(32 << 20, TN * row_ws_bytes + (8 << 20))))

    out_bytes = 2 * nblocks * P * 4
    cost = pl.CostEstimate(
        flops=int(6 * N_pad * L),
        transcendentals=int(N_pad if (future_discount != 1.0 and S > 1) else 0),
        bytes_accessed=int(pred2.size * pred2.dtype.itemsize
                           + targ2.size * targ2.dtype.itemsize + out_bytes))

    kernel = functools.partial(_spatial_reg_loss_kernel, norm,
                               float(ignore_index), float(future_discount),
                               S, TN, C, P)

    sums, cnts = pl.pallas_call(
        kernel,
        out_shape=(jax.ShapeDtypeStruct((nblocks, 1, P), jnp.float32),
                   jax.ShapeDtypeStruct((nblocks, 1, P), jnp.float32)),
        grid_spec=pltpu.PrefetchScalarGridSpec(
            num_scalar_prefetch=0,
            grid=(nblocks,),
            in_specs=[
                pl.BlockSpec((TN, L), lambda n: (n, 0)),       # prediction
                pl.BlockSpec((TN, L), lambda n: (n, 0)),       # target
            ],
            out_specs=[
                pl.BlockSpec((1, 1, P), lambda n: (n, 0, 0)),  # partial sums
                pl.BlockSpec((1, 1, P), lambda n: (n, 0, 0)),  # partial counts
            ],
        ),
        compiler_params=pltpu.CompilerParams(
            dimension_semantics=("parallel",),
            vmem_limit_bytes=vmem_limit),
        cost_estimate=cost,
    )(pred2, targ2)

    total = jnp.sum(sums)
    cnt = jnp.sum(cnts)
    # mask.sum() == 0 -> return 0.0 (same as prediction.new_zeros(1)[0])
    return jnp.where(cnt > 0.0, total / cnt, jnp.float32(0.0))


def _reference_loss(prediction, target, *, norm, ignore_index=255,
                    future_discount=1.0):
    """Pure-JAX reference mirroring the PyTorch forward."""
    B, S, C, H, W = prediction.shape
    mask = target[:, :, :1] != ignore_index
    d = prediction - target
    if norm == 1:
        e = jnp.abs(d)
    elif norm == 2:
        e = d * d
    else:
        ad = jnp.abs(d)
        e = jnp.where(ad < 1.0, 0.5 * d * d, ad - 0.5)
    loss = jnp.sum(e, axis=2, keepdims=True)
    disc = jnp.float32(future_discount) ** jnp.arange(S, dtype=jnp.float32)
    loss = loss * disc.reshape(1, S, 1, 1, 1)
    cnt = jnp.sum(mask)
    return jnp.where(cnt > 0,
                     jnp.sum(jnp.where(mask, loss, 0.0)) / cnt.astype(jnp.float32),
                     0.0)


if __name__ == "__main__":
    B, S, C, H, W = 2, 3, 4, 16, 16
    key = jax.random.PRNGKey(0)
    kp, kt = jax.random.split(key)
    pred = jax.random.normal(kp, (B, S, C, H, W), dtype=jnp.float32)
    targ = jax.random.normal(kt, (B, S, C, H, W), dtype=jnp.float32)
    # Mark some pixels as ignored (channel 0 == ignore_index) to exercise masking.
    targ = targ.at[0, 0, 0, :4, :].set(255.0)
    targ = targ.at[1, 2, 0, 8:, 8:].set(255.0)

    ok = True
    for norm, discount in [(1, 1.0), (2, 0.95), (1.5, 0.9)]:
        out = jax.block_until_ready(spatial_regression_loss(
            pred, targ, norm=norm, ignore_index=255, future_discount=discount))
        ref = jax.block_until_ready(_reference_loss(
            pred, targ, norm=norm, ignore_index=255, future_discount=discount))
        if not bool(jnp.allclose(out, ref, rtol=1e-4, atol=1e-5)):
            ok = False
            print(f"MISMATCH norm={norm}: kernel={out} ref={ref}")

    # Fully-ignored target -> 0.0 (the mask.sum() == 0 branch).
    targ_ign = targ.at[:, :, 0].set(255.0)
    out0 = jax.block_until_ready(spatial_regression_loss(
        pred, targ_ign, norm=1, ignore_index=255, future_discount=0.95))
    if not bool(jnp.allclose(out0, 0.0, atol=1e-6)):
        ok = False
        print(f"MISMATCH all-ignored: kernel={out0} expected 0.0")

    if ok:
        print("KERNEL_OK")
</pallas_src>

<mosaic_0001>
module attributes {stable_mosaic.version = 11 : i64} {
  func.func @_spatial_reg_loss_kernel(%arg0: i32, %arg1: memref<8x1024xf32, #tpu.memory_space<vmem>>, %arg2: memref<8x1024xf32, #tpu.memory_space<vmem>>, %arg3: memref<1x1x256xf32, #tpu.memory_space<vmem>>, %arg4: memref<1x1x256xf32, #tpu.memory_space<vmem>>) attributes {dimension_semantics = [#tpu.dimension_semantics<parallel>], iteration_bounds = array<i64: 1>, scalar_prefetch = 0 : i64, scratch_operands = 0 : i64, tpu.core_type = #tpu.core_type<tc>, window_params = [{transform_indices = @transform_0, window_bounds = array<i64: 8, 1024>}, {transform_indices = @transform_1, window_bounds = array<i64: 8, 1024>}, {transform_indices = @transform_2, window_bounds = array<i64: 1, 1, 256>}, {transform_indices = @transform_3, window_bounds = array<i64: 1, 1, 256>}]} {
    %c0 = arith.constant 0 : index
    %c0_0 = arith.constant 0 : index
    %0 = vector.load %arg1[%c0, %c0_0] : memref<8x1024xf32, #tpu.memory_space<vmem>>, vector<8x1024xf32>
    %c0_1 = arith.constant 0 : index
    %c0_2 = arith.constant 0 : index
    %1 = vector.load %arg2[%c0_1, %c0_2] : memref<8x1024xf32, #tpu.memory_space<vmem>>, vector<8x1024xf32>
    %2 = arith.subf %0, %1 : vector<8x1024xf32>
    %3 = math.absf %2 : vector<8x1024xf32>
    %4 = vector.extract_strided_slice %3 {offsets = [0, 0], sizes = [8, 256], strides = [1, 1]} : vector<8x1024xf32> to vector<8x256xf32>
    %5 = vector.extract_strided_slice %3 {offsets = [0, 256], sizes = [8, 256], strides = [1, 1]} : vector<8x1024xf32> to vector<8x256xf32>
    %6 = arith.addf %4, %5 : vector<8x256xf32>
    %7 = vector.extract_strided_slice %3 {offsets = [0, 512], sizes = [8, 256], strides = [1, 1]} : vector<8x1024xf32> to vector<8x256xf32>
    %8 = arith.addf %6, %7 : vector<8x256xf32>
    %9 = vector.extract_strided_slice %3 {offsets = [0, 768], sizes = [8, 256], strides = [1, 1]} : vector<8x1024xf32> to vector<8x256xf32>
    %10 = arith.addf %8, %9 : vector<8x256xf32>
    %11 = vector.extract_strided_slice %1 {offsets = [0, 0], sizes = [8, 256], strides = [1, 1]} : vector<8x1024xf32> to vector<8x256xf32>
    %cst = arith.constant 2.550000e+02 : f32
    %12 = vector.broadcast %cst : f32 to vector<8x256xf32>
    %13 = arith.cmpf one, %11, %12 : vector<8x256xf32>
    %14 = arith.extui %13 : vector<8x256xi1> to vector<8x256xi32>
    %15 = arith.sitofp %14 : vector<8x256xi32> to vector<8x256xf32>
    %16 = arith.mulf %10, %15 : vector<8x256xf32>
    %cst_3 = arith.constant dense<0.000000e+00> : vector<256xf32>
    %17 = vector.multi_reduction <add>, %16, %cst_3 [0] : vector<8x256xf32> to vector<256xf32>
    %18 = vector.shape_cast %17 : vector<256xf32> to vector<1x256xf32>
    %c0_4 = arith.constant 0 : index
    %c0_5 = arith.constant 0 : index
    %c0_6 = arith.constant 0 : index
    %19 = vector.load %arg3[%c0_4, %c0_5, %c0_6] : memref<1x1x256xf32, #tpu.memory_space<vmem>>, vector<1x1x256xf32>
    %20 = vector.shape_cast %19 : vector<1x1x256xf32> to vector<1x256xf32>
    %21 = vector.shape_cast %18 : vector<1x256xf32> to vector<1x1x256xf32>
    tpu.vector_store %arg3[%c0_4, %c0_5, %c0_6], %21 {strides = array<i32>} : memref<1x1x256xf32, #tpu.memory_space<vmem>>, vector<1x1x256xf32>,
    %cst_7 = arith.constant dense<0.000000e+00> : vector<256xf32>
    %22 = vector.multi_reduction <add>, %15, %cst_7 [0] : vector<8x256xf32> to vector<256xf32>
    %23 = vector.shape_cast %22 : vector<256xf32> to vector<1x256xf32>
    %c0_8 = arith.constant 0 : index
    %c0_9 = arith.constant 0 : index
    %c0_10 = arith.constant 0 : index
    %24 = vector.load %arg4[%c0_8, %c0_9, %c0_10] : memref<1x1x256xf32, #tpu.memory_space<vmem>>, vector<1x1x256xf32>
    %25 = vector.shape_cast %24 : vector<1x1x256xf32> to vector<1x256xf32>
    %26 = vector.shape_cast %23 : vector<1x256xf32> to vector<1x1x256xf32>
    tpu.vector_store %arg4[%c0_8, %c0_9, %c0_10], %26 {strides = array<i32>} : memref<1x1x256xf32, #tpu.memory_space<vmem>>, vector<1x1x256xf32>,
    return
  }
  func.func @transform_0(%arg0: i32) -> (i32, i32) {
    %c0_i32 = arith.constant 0 : i32
    %c0_i32_0 = arith.constant 0 : i32
    return %arg0, %c0_i32 : i32, i32
  }
  func.func @transform_1(%arg0: i32) -> (i32, i32) {
    %c0_i32 = arith.constant 0 : i32
    %c0_i32_0 = arith.constant 0 : i32
    return %arg0, %c0_i32 : i32, i32
  }
  func.func @transform_2(%arg0: i32) -> (i32, i32, i32) {
    %c0_i32 = arith.constant 0 : i32
    %c0_i32_0 = arith.constant 0 : i32
    %c0_i32_1 = arith.constant 0 : i32
    return %arg0, %c0_i32, %c0_i32_0 : i32, i32, i32
  }
  func.func @transform_3(%arg0: i32) -> (i32, i32, i32) {
    %c0_i32 = arith.constant 0 : i32
    %c0_i32_0 = arith.constant 0 : i32
    %c0_i32_1 = arith.constant 0 : i32
    return %arg0, %c0_i32, %c0_i32_0 : i32, i32, i32
  }
}

</mosaic_0001>

<llo_original>
// kernel: tpu_custom_call.1
$region0: #{tpu_custom_call.1}
  #allocation0 [shape = 'u32[]', space=smem, size = 0x4, offset = 0x4, fixed_abs, tag = 'smem constant byte address 0x4 - core index']
  #allocation1 [shape = 'u32[144,128]{1,0:T(1,128)}', space=vmem, size = 0x12000, scoped, tag = 'internal scratch']
  %s0 = inlined_call_operand.hbm [shape: f32[8,1024], index: 0, kind: input, shape index: {}]
  %s1 = inlined_call_operand.hbm [shape: f32[8,1024], index: 1, kind: input, shape index: {}]
  %s2 = inlined_call_operand.hbm [shape: f32[1,1,256], index: 2, kind: output, shape index: {0}]
  %s3 = inlined_call_operand.hbm [shape: f32[1,1,256], index: 3, kind: output, shape index: {1}]
  %4 = xla_tuple %s2, %s3
  %s5 = sld [smem:[#allocation0]]
  $region34: #{tpu_custom_call.1} parent=0
    _
  %s7 = ssub.s32 1, %s5
  %s8 = scalar_select 0, %s7, %s5
  $region1: #{tpu_custom_call.1} parent=0
    #allocation2 [shape = 'u8[32768]{0}', space=vmem, size = 0x8000, scoped, tag = 'input window, operand 0, single buffered']
    #allocation3 [shape = 's32[1]{0}', space=sflag, size = 0x4, scoped, tag = 'scoped memory for tpu_custom_call.1']
    #allocation4 [shape = 's32[1]{0}', space=sflag, size = 0x4, scoped, tag = 'scoped memory for tpu_custom_call.1']
    #allocation5 [shape = 'u8[32768]{0}', space=vmem, size = 0x8000, scoped, tag = 'input window, operand 1, single buffered']
    #allocation6 [shape = 's32[1]{0}', space=sflag, size = 0x4, scoped, tag = 'scoped memory for tpu_custom_call.1']
    #allocation7 [shape = 'u8[1024]{0}', space=vmem, size = 0x400, scoped, tag = 'output window, operand 0, single buffered']
    #allocation8 [shape = 'u8[1024]{0}', space=vmem, size = 0x400, scoped, tag = 'output window, operand 1, single buffered']
    #allocation9 [shape = 's32[1]{0}', space=sflag, size = 0x4, scoped, tag = 'scoped memory for tpu_custom_call.1']
    %9 = vsyncpa [#allocation3], 0
    %10 = vsyncpa [#allocation6], 0
    %11 = vsyncpa [#allocation4], 0
    %12 = vsyncpa [#allocation9], 0
    // Predicated region
    $region2: #{tpu_custom_call.1} parent=1 // pred_check
      _
    $region3: #{tpu_custom_call.1} parent=1 // pred_check_branch
      %14 = sbr.rel (0) target = $region5
    $region4: #{tpu_custom_call.1} parent=1 // pred_region
      %s16 = ssub.s32 1024, 1024
      %17 = vsyncadd [#allocation3], %s16
      %s19 = sshll.u32 [#allocation2], 4
      %s20 = int_to_ptr.vmem [resolvable:$true] %s19
      %22 = dma.hbm_to_vmem [thread:$0]  %s0, 1024, %s20, [#allocation3]
    $region5: #{tpu_custom_call.1} parent=1 // pred_fallthru
      _
    // Predicated region
    $region6: #{tpu_custom_call.1} parent=1 // pred_check
      _
    $region7: #{tpu_custom_call.1} parent=1 // pred_check_branch
      %24 = sbr.rel (0) target = $region9
    $region8: #{tpu_custom_call.1} parent=1 // pred_region
      %s26 = ssub.s32 1024, 1024
      %27 = vsyncadd [#allocation6], %s26
      %s29 = sshll.u32 [#allocation5], 4
      %s30 = int_to_ptr.vmem [resolvable:$true] %s29
      %32 = dma.hbm_to_vmem [thread:$0]  %s1, 1024, %s30, [#allocation6]
    $region9: #{tpu_custom_call.1} parent=1 // pred_fallthru
      _
    // Predicated region
    $region10: #{tpu_custom_call.1} parent=1 // pred_check
      _
    $region11: #{tpu_custom_call.1} parent=1 // pred_check_branch
      %34 = sbr.rel (0) target = $region13
    $region12: #{tpu_custom_call.1} parent=1 // pred_region
      %35 = dma.done [#allocation3], 1024
    $region13: #{tpu_custom_call.1} parent=1 // pred_fallthru
      _
    // Predicated region
    $region14: #{tpu_custom_call.1} parent=1 // pred_check
      _
    $region15: #{tpu_custom_call.1} parent=1 // pred_check_branch
      %37 = sbr.rel (0) target = $region17
    $region16: #{tpu_custom_call.1} parent=1 // pred_region
      %38 = dma.done [#allocation6], 1024
    $region17: #{tpu_custom_call.1} parent=1 // pred_fallthru
      _
    %v39 = vld [vmem:[#allocation2] sm:$0xff]
    %v40 = vld [vmem:[#allocation2 + $0x8] sm:$0xff]
    %v41 = vld [vmem:[#allocation2 + $0x10] sm:$0xff]
    %v42 = vld [vmem:[#allocation2 + $0x18] sm:$0xff]
    %v43 = vld [vmem:[#allocation2 + $0x20] sm:$0xff]
    %v44 = vld [vmem:[#allocation2 + $0x28] sm:$0xff]
    %v45 = vld [vmem:[#allocation2 + $0x30] sm:$0xff]
    %v46 = vld [vmem:[#allocation2 + $0x38] sm:$0xff]
    %v47 = vld [vmem:[#allocation5] sm:$0xff]
    %v48 = vld [vmem:[#allocation5 + $0x8] sm:$0xff]
    %v49 = vld [vmem:[#allocation5 + $0x10] sm:$0xff]
    %v50 = vld [vmem:[#allocation5 + $0x18] sm:$0xff]
    %v51 = vld [vmem:[#allocation5 + $0x20] sm:$0xff]
    %v52 = vld [vmem:[#allocation5 + $0x28] sm:$0xff]
    %v53 = vld [vmem:[#allocation5 + $0x30] sm:$0xff]
    %v54 = vld [vmem:[#allocation5 + $0x38] sm:$0xff]
    %v55 = vsub.f32 %v39, %v47
    %v56 = vsub.f32 %v40, %v48
    %v57 = vsub.f32 %v41, %v49
    %v58 = vsub.f32 %v42, %v50
    %v59 = vsub.f32 %v43, %v51
    %v60 = vsub.f32 %v44, %v52
    %v61 = vsub.f32 %v45, %v53
    %v62 = vsub.f32 %v46, %v54
    %v63 = vand.u32 2147483647, %v55
    %v64 = vand.u32 2147483647, %v56
    %v65 = vand.u32 2147483647, %v57
    %v66 = vand.u32 2147483647, %v58
    %v67 = vand.u32 2147483647, %v59
    %v68 = vand.u32 2147483647, %v60
    %v69 = vand.u32 2147483647, %v61
    %v70 = vand.u32 2147483647, %v62
    %v71 = vadd.f32 %v63, %v65
    %v72 = vadd.f32 %v64, %v66
    %v73 = vadd.f32 %v71, %v67
    %v74 = vadd.f32 %v72, %v68
    %v75 = vadd.f32 %v73, %v69
    %v76 = vadd.f32 %v74, %v70
    %vm77 = vcmp.ne.f32.partialorder %v47, 255.0
    %vm78 = vcmp.ne.f32.partialorder %v48, 255.0
    %v79 = vsel %vm77, 1, 0
    %v80 = vsel %vm78, 1, 0
    %v81 = vcvt.s32.f32 %v79
    %v82 = vcvt.s32.f32 %v80
    %v83 = vmul.f32 %v75, %v81
    %v84 = vmul.f32 %v76, %v82
    %v85 = vrot.slane %v83, 4
    %v86 = vadd.f32 %v83, %v85
    %v87 = vrot.slane %v86, 2
    %v88 = vadd.f32 %v86, %v87
    %v89 = vrot.slane %v88, 1
    %v90 = vadd.f32 %v88, %v89
    %v91 = vrot.slane %v84, 4
    %v92 = vadd.f32 %v84, %v91
    %v93 = vrot.slane %v92, 2
    %v94 = vadd.f32 %v92, %v93
    %v95 = vrot.slane %v94, 1
    %v96 = vadd.f32 %v94, %v95
    %v99 = vcombine.low %v90, %v96
    %v101 = vunpack.c.l.s4 1966171168
    %v102 = vunpack.c.0.s8 %v101
    %v103 = vlaneseq
    %v104 = vshrl.u32 %v103, 7
    %v105 = vsub.s32 %v102, %v104
    %v106 = vrot.slane %v99, %v105
    %v108 = vunpack.c.l.s4 1966171168
    %v109 = vunpack.c.0.s8 %v108
    %v110 = vlaneseq
    %v111 = vshrl.u32 %v110, 7
    %v112 = vsub.s32 %v109, %v111
    %v113 = vrot.slane %v106, %v112
    %v115 = vlaneseq
    %vm116 = vcmp.ge.s32.totalorder %v115, 0
    %vm117 = vcmp.lt.s32.totalorder %v115, 256
    %vm118 = vmand %vm116, %vm117
    %119 = vst.msk [vmem:[#allocation7] sm:$0x3] %vm118, %v113
    %v120 = vrot.slane %v81, 4
    %v121 = vadd.f32 %v81, %v120
    %v122 = vrot.slane %v121, 2
    %v123 = vadd.f32 %v121, %v122
    %v124 = vrot.slane %v123, 1
    %v125 = vadd.f32 %v123, %v124
    %v126 = vrot.slane %v82, 4
    %v127 = vadd.f32 %v82, %v126
    %v128 = vrot.slane %v127, 2
    %v129 = vadd.f32 %v127, %v128
    %v130 = vrot.slane %v129, 1
    %v131 = vadd.f32 %v129, %v130
    %v134 = vcombine.low %v125, %v131
    %v136 = vunpack.c.l.s4 1966171168
    %v137 = vunpack.c.0.s8 %v136
    %v138 = vlaneseq
    %v139 = vshrl.u32 %v138, 7
    %v140 = vsub.s32 %v137, %v139
    %v141 = vrot.slane %v134, %v140
    %v143 = vunpack.c.l.s4 1966171168
    %v144 = vunpack.c.0.s8 %v143
    %v145 = vlaneseq
    %v146 = vshrl.u32 %v145, 7
    %v147 = vsub.s32 %v144, %v146
    %v148 = vrot.slane %v141, %v147
    %150 = vst.msk [vmem:[#allocation8] sm:$0x3] %vm118, %v148
    // Predicated region
    $region18: #{tpu_custom_call.1} parent=1 // pred_check
      _
    $region19: #{tpu_custom_call.1} parent=1 // pred_check_branch
      %152 = sbr.rel (0) target = $region21
    $region20: #{tpu_custom_call.1} parent=1 // pred_region
      %s154 = ssub.s32 32, 32
      %155 = vsyncadd [#allocation4], %s154
      %s157 = sshll.u32 [#allocation7], 4
      %s158 = int_to_ptr.vmem [resolvable:$true] %s157
      %160 = dma.vmem_to_hbm [thread:$0]  %s158, 32, %s2, [#allocation4]
    $region21: #{tpu_custom_call.1} parent=1 // pred_fallthru
      _
    // Predicated region
    $region22: #{tpu_custom_call.1} parent=1 // pred_check
      _
    $region23: #{tpu_custom_call.1} parent=1 // pred_check_branch
      %162 = sbr.rel (0) target = $region25
    $region24: #{tpu_custom_call.1} parent=1 // pred_region
      %s164 = ssub.s32 32, 32
      %165 = vsyncadd [#allocation9], %s164
      %s167 = sshll.u32 [#allocation8], 4
      %s168 = int_to_ptr.vmem [resolvable:$true] %s167
      %170 = dma.vmem_to_hbm [thread:$0]  %s168, 32, %s3, [#allocation9]
    $region25: #{tpu_custom_call.1} parent=1 // pred_fallthru
      _
    // Predicated region
    $region26: #{tpu_custom_call.1} parent=1 // pred_check
      _
    $region27: #{tpu_custom_call.1} parent=1 // pred_check_branch
      %172 = sbr.rel (0) target = $region29
    $region28: #{tpu_custom_call.1} parent=1 // pred_region
      %173 = dma.done [#allocation4], 32
    $region29: #{tpu_custom_call.1} parent=1 // pred_fallthru
      _
    // Predicated region
    $region30: #{tpu_custom_call.1} parent=1 // pred_check
      _
    $region31: #{tpu_custom_call.1} parent=1 // pred_check_branch
      %175 = sbr.rel (0) target = $region33
    $region32: #{tpu_custom_call.1} parent=1 // pred_region
      %176 = dma.done [#allocation9], 32
    $region33: #{tpu_custom_call.1} parent=1 // pred_fallthru
      _
    %177 = vsyncpa [#allocation3], 1
    %178 = vsyncpa [#allocation6], 1
    %179 = vsyncpa [#allocation4], 1
    %180 = vsyncpa [#allocation9], 1

</llo_original>
